<compile_context>
chip_gen: v7x
topology: tpu7x:2x2x1
jax: 0.10.0
libtpu: 0.0.40
codegen_flags: <defaults>
</compile_context>

<pallas_src>
import functools
from math import sqrt

import jax
import jax.numpy as jnp
from jax.experimental import pallas as pl
from jax.experimental.pallas import tpu as pltpu


# ----------------------------------------------------------------------------
# Small host-side helpers
# ----------------------------------------------------------------------------
def _cdiv(a, b):
    return -(-a // b)


def _round_up(a, b):
    return _cdiv(a, b) * b


def _lane_pad(n):
    return _round_up(n, 128)


def _vmem_budget_bytes():
    """Per-generation (physical-VMEM-aware) tile budget and scoped-vmem cap."""
    mib = 1024 * 1024
    try:
        phys = int(pltpu.get_tpu_info().vmem_capacity_bytes)
    except Exception:
        phys = 64 * mib  # conservative: assume v7x-sized VMEM
    if phys <= 64 * mib:            # v7x: 64 MiB physical per TensorCore
        return 28 * mib, 40 * mib
    return 48 * mib, 72 * mib       # v5e / v6e: 128 MiB physical


def _choose_tile_rows(n_rows, per_row_bytes, weight_bytes, max_tile_rows,
                      vmem_budget_bytes, align):
    """Largest aligned row tile fitting the budget, with an EVEN (>=2) number
    of grid steps whenever there is enough work (v7x has two TensorCores)."""
    budget_rows = (vmem_budget_bytes - weight_bytes) // max(1, per_row_bytes)
    tr = int(min(max_tile_rows, max(align, budget_rows)))
    tr = max(align, (tr // align) * align)
    tr = min(tr, _round_up(n_rows, align))
    steps = _cdiv(n_rows, tr)
    if n_rows >= 2 * align and (steps < 2 or steps % 2 == 1):
        target = max(2, steps + (steps % 2))
        tr = max(align, _round_up(_cdiv(n_rows, target), align))
    return tr


# ----------------------------------------------------------------------------
# Pallas kernel: all degrees fused into one lane-dense matmul per row tile
# ----------------------------------------------------------------------------
def _fused_linear_kernel(*refs, in_slots):
    """refs = (x_0..x_{G-1}, w, o, xcat_scratch).

    Copies each per-degree x tile into the (TR, K) VMEM scratch at its static
    lane offset (rides on idle vld/vst slots — the kernel is HBM-bound), then
    issues one (TR, K) @ (K, N_pad) MXU matmul with f32 accumulation and one
    unmasked lane-dense store into the (TR, N_pad) output tile.
    """
    n = len(in_slots)
    x_refs = refs[:n]
    w_ref = refs[n]
    o_ref = refs[n + 1]
    xcat_ref = refs[n + 2]

    for (off, width), x_ref in zip(in_slots, x_refs):
        xcat_ref[:, off:off + width] = x_ref[...].astype(xcat_ref.dtype)

    o_ref[...] = jnp.dot(
        xcat_ref[...], w_ref[...], preferred_element_type=jnp.float32
    ).astype(o_ref.dtype)


# ----------------------------------------------------------------------------
# Static (out-of-jit) weight packing: block_diag(kron(W_g, I_{M_g})), 128-lane
# padded output axis.  K (contraction axis) is exact — no garbage pad columns.
# ----------------------------------------------------------------------------
def pack_linear_se3(weights):
    """weights: {degree(str): (d_in, d_out)} -> (w_packed (K, N_pad) f32, meta).

    meta: tuple of (degree, d_in, d_out, m, in_off, out_off).
    """
    meta = []
    in_off = out_off = 0
    for degree, w in weights.items():
        d_in, d_out = int(w.shape[0]), int(w.shape[1])
        m = 2 * int(degree) + 1
        meta.append((degree, d_in, d_out, m, in_off, out_off))
        in_off += d_in * m
        out_off += d_out * m
    k_total, n_out = in_off, out_off
    n_pad = _lane_pad(n_out)

    w_packed = jnp.zeros((k_total, n_pad), dtype=jnp.float32)
    for degree, d_in, d_out, m, i0, o0 in meta:
        w = weights[degree].astype(jnp.float32)
        w_exp = jnp.kron(w, jnp.eye(m, dtype=jnp.float32)) if m > 1 else w
        w_packed = w_packed.at[i0:i0 + d_in * m, o0:o0 + d_out * m].set(w_exp)
    return w_packed, tuple(meta)


# ----------------------------------------------------------------------------
# LinearSE3 forward — one fused pallas_call for all degrees
# ----------------------------------------------------------------------------
def linear_se3_forward(x_dict, w_packed, *, meta, max_tile_rows=8192):
    """x_dict: {degree(str): (B, N, D_in, M)}; w_packed/meta from pack_linear_se3."""
    k_total, n_pad = int(w_packed.shape[0]), int(w_packed.shape[1])
    first = x_dict[meta[0][0]]
    B, N = int(first.shape[0]), int(first.shape[1])
    n_rows = B * N
    dtype = jnp.float32
    itemsize = jnp.dtype(dtype).itemsize

    # Free, row-major reshape: (B, N, D_in, M) -> (B*N, D_in*M).
    x2d_list = []
    for degree, d_in, d_out, m, i0, o0 in meta:
        x2d_list.append(x_dict[degree].astype(dtype).reshape(n_rows, d_in * m))

    # Lane-padding-aware VMEM byte model: narrow last dims occupy 128 lanes.
    in_row_bytes = sum(_lane_pad(d_in * m) for _, d_in, _, m, _, _ in meta) * itemsize
    out_row_bytes = n_pad * itemsize
    scratch_row_bytes = _lane_pad(k_total) * itemsize
    per_row = 2 * (in_row_bytes + out_row_bytes) + scratch_row_bytes
    weight_bytes = 2 * _round_up(k_total, 8) * n_pad * itemsize  # double-buffered

    budget, limit_cap = _vmem_budget_bytes()
    align = 8  # f32 sublane alignment
    tr = _choose_tile_rows(n_rows, per_row, weight_bytes, max_tile_rows, budget, align)
    grid = (_cdiv(n_rows, tr),)

    needed = tr * per_row + weight_bytes
    vmem_limit = int(min(limit_cap, max(4 << 20, needed * 5 // 4 + (2 << 20))))

    in_slots = tuple((i0, d_in * m) for _, d_in, _, m, i0, _ in meta)
    kernel = functools.partial(_fused_linear_kernel, in_slots=in_slots)

    in_specs = (
        [pl.BlockSpec((tr, d_in * m), lambda i: (i, 0))
         for _, d_in, _, m, _, _ in meta]
        + [pl.BlockSpec((k_total, n_pad), lambda i: (0, 0))]  # grid-invariant weight
    )

    out2d = pl.pallas_call(
        kernel,
        out_shape=jax.ShapeDtypeStruct((n_rows, n_pad), dtype),
        grid_spec=pltpu.PrefetchScalarGridSpec(
            num_scalar_prefetch=0,
            grid=grid,
            in_specs=in_specs,
            out_specs=pl.BlockSpec((tr, n_pad), lambda i: (i, 0)),
            scratch_shapes=[pltpu.VMEM((tr, k_total), dtype)],
        ),
        compiler_params=pltpu.CompilerParams(
            dimension_semantics=("parallel",),
            vmem_limit_bytes=vmem_limit,
        ),
    )(*x2d_list, w_packed)

    # Slice each degree's lanes back out and reshape (free) to (B, N, D_out, M).
    out = {}
    for degree, d_in, d_out, m, i0, o0 in meta:
        out[degree] = out2d[:, o0:o0 + d_out * m].reshape(B, N, d_out, m)
    return out


# ----------------------------------------------------------------------------
# Deterministic parameter init (mirrors torch.randn(dim_in, dim_out)/sqrt(dim_in))
# ----------------------------------------------------------------------------
def init_linear_se3(key, fiber_in, fiber_out):
    weights = {}
    for degree, dim_in in fiber_in.items():
        if degree not in fiber_out:
            continue
        dim_out = fiber_out[degree]
        key, sub = jax.random.split(key)
        weights[str(degree)] = (
            jax.random.normal(sub, (dim_in, dim_out), dtype=jnp.float32)
            / sqrt(dim_in)
        )
    return weights


if __name__ == "__main__":
    key = jax.random.PRNGKey(0)

    # Fibers: degree -> channel dim. Common degrees get a weight.
    fiber_in = {0: 32, 1: 16, 2: 8}
    fiber_out = {0: 16, 1: 16, 2: 8}
    B, N = 2, 8  # batch, nodes

    key, wkey = jax.random.split(key)
    weights = init_linear_se3(wkey, fiber_in, fiber_out)

    # Weight packing happens once, eagerly, outside the jitted forward.
    w_packed, meta = pack_linear_se3(weights)

    # Build input dict: x[degree] has shape (B, N, dim_in, 2*degree + 1).
    x_dict = {}
    for degree, dim_in in fiber_in.items():
        if str(degree) not in weights:
            continue
        key, sub = jax.random.split(key)
        m = 2 * degree + 1
        x_dict[str(degree)] = jax.random.normal(
            sub, (B, N, dim_in, m), dtype=jnp.float32
        )

    fwd = jax.jit(functools.partial(linear_se3_forward, meta=meta))
    out = fwd(x_dict, w_packed)
    out = jax.tree_util.tree_map(jax.block_until_ready, out)

    # Reference check against plain einsum (same semantics as the PyTorch module).
    # Tolerance leaves room for default-precision MXU passes on real hardware.
    for degree, w in weights.items():
        x = x_dict[degree]
        ref = jnp.einsum("bndm,de->bnem", x, w)
        assert out[degree].shape == ref.shape, (out[degree].shape, ref.shape)
        assert jnp.allclose(out[degree], ref, atol=1e-2, rtol=1e-2), degree

    print("KERNEL_OK")
</pallas_src>

<mosaic_0001>
module attributes {stable_mosaic.version = 11 : i64} {
  func.func @_fused_linear_kernel(%arg0: i32, %arg1: memref<8x32xf32, #tpu.memory_space<vmem>>, %arg2: memref<8x48xf32, #tpu.memory_space<vmem>>, %arg3: memref<8x40xf32, #tpu.memory_space<vmem>>, %arg4: memref<120x128xf32, #tpu.memory_space<vmem>>, %arg5: memref<8x128xf32, #tpu.memory_space<vmem>>, %arg6: memref<8x120xf32, #tpu.memory_space<vmem>>) attributes {dimension_semantics = [#tpu.dimension_semantics<parallel>], iteration_bounds = array<i64: 2>, scalar_prefetch = 0 : i64, scratch_operands = 1 : i64, tpu.core_type = #tpu.core_type<tc>, window_params = [{transform_indices = @transform_0, window_bounds = array<i64: 8, 32>}, {transform_indices = @transform_1, window_bounds = array<i64: 8, 48>}, {transform_indices = @transform_2, window_bounds = array<i64: 8, 40>}, {pipeline_mode = #tpu.pipeline_mode<synchronous>, transform_indices = @transform_3, window_bounds = array<i64: 120, 128>}, {transform_indices = @transform_4, window_bounds = array<i64: 8, 128>}]} {
    %c0 = arith.constant 0 : index
    %c0_0 = arith.constant 0 : index
    %0 = vector.load %arg1[%c0, %c0_0] : memref<8x32xf32, #tpu.memory_space<vmem>>, vector<8x32xf32>
    %c0_1 = arith.constant 0 : index
    %c0_2 = arith.constant 0 : index
    %1 = vector.load %arg6[%c0_1, %c0_2] : memref<8x120xf32, #tpu.memory_space<vmem>>, vector<8x32xf32>
    tpu.vector_store %arg6[%c0_1, %c0_2], %0 {strides = array<i32>} : memref<8x120xf32, #tpu.memory_space<vmem>>, vector<8x32xf32>,
    %c0_3 = arith.constant 0 : index
    %c0_4 = arith.constant 0 : index
    %2 = vector.load %arg2[%c0_3, %c0_4] : memref<8x48xf32, #tpu.memory_space<vmem>>, vector<8x48xf32>
    %c0_5 = arith.constant 0 : index
    %c32 = arith.constant 32 : index
    %3 = vector.load %arg6[%c0_5, %c32] : memref<8x120xf32, #tpu.memory_space<vmem>>, vector<8x48xf32>
    tpu.vector_store %arg6[%c0_5, %c32], %2 {strides = array<i32>} : memref<8x120xf32, #tpu.memory_space<vmem>>, vector<8x48xf32>,
    %c0_6 = arith.constant 0 : index
    %c0_7 = arith.constant 0 : index
    %4 = vector.load %arg3[%c0_6, %c0_7] : memref<8x40xf32, #tpu.memory_space<vmem>>, vector<8x40xf32>
    %c0_8 = arith.constant 0 : index
    %c80 = arith.constant 80 : index
    %5 = vector.load %arg6[%c0_8, %c80] : memref<8x120xf32, #tpu.memory_space<vmem>>, vector<8x40xf32>
    tpu.vector_store %arg6[%c0_8, %c80], %4 {strides = array<i32>} : memref<8x120xf32, #tpu.memory_space<vmem>>, vector<8x40xf32>,
    %c0_9 = arith.constant 0 : index
    %c0_10 = arith.constant 0 : index
    %6 = vector.load %arg6[%c0_9, %c0_10] : memref<8x120xf32, #tpu.memory_space<vmem>>, vector<8x120xf32>
    %c0_11 = arith.constant 0 : index
    %c0_12 = arith.constant 0 : index
    %7 = vector.load %arg4[%c0_11, %c0_12] : memref<120x128xf32, #tpu.memory_space<vmem>>, vector<120x128xf32>
    %cst = arith.constant dense<0.000000e+00> : vector<8x128xf32>
    %8 = tpu.matmul %6, %7, %cst {dimension_numbers = #tpu.dot_dimension_numbers<[1], [0], [0], [1], [0, 0, 1, 1], [], []>} : vector<8x120xf32>, vector<120x128xf32>, vector<8x128xf32> -> vector<8x128xf32>
    %c0_13 = arith.constant 0 : index
    %c0_14 = arith.constant 0 : index
    %9 = vector.load %arg5[%c0_13, %c0_14] : memref<8x128xf32, #tpu.memory_space<vmem>>, vector<8x128xf32>
    tpu.vector_store %arg5[%c0_13, %c0_14], %8 {strides = array<i32>} : memref<8x128xf32, #tpu.memory_space<vmem>>, vector<8x128xf32>,
    return
  }
  func.func @transform_0(%arg0: i32) -> (i32, i32) {
    %c0_i32 = arith.constant 0 : i32
    %c0_i32_0 = arith.constant 0 : i32
    return %arg0, %c0_i32 : i32, i32
  }
  func.func @transform_1(%arg0: i32) -> (i32, i32) {
    %c0_i32 = arith.constant 0 : i32
    %c0_i32_0 = arith.constant 0 : i32
    return %arg0, %c0_i32 : i32, i32
  }
  func.func @transform_2(%arg0: i32) -> (i32, i32) {
    %c0_i32 = arith.constant 0 : i32
    %c0_i32_0 = arith.constant 0 : i32
    return %arg0, %c0_i32 : i32, i32
  }
  func.func @transform_3(%arg0: i32) -> (i32, i32) {
    %c0_i32 = arith.constant 0 : i32
    %c0_i32_0 = arith.constant 0 : i32
    %c0_i32_1 = arith.constant 0 : i32
    return %c0_i32, %c0_i32_0 : i32, i32
  }
  func.func @transform_4(%arg0: i32) -> (i32, i32) {
    %c0_i32 = arith.constant 0 : i32
    %c0_i32_0 = arith.constant 0 : i32
    return %arg0, %c0_i32 : i32, i32
  }
}

</mosaic_0001>

<llo_original>
// kernel: linear_se3_forward.1
$region0: #{linear_se3_forward.1}
  #allocation0 [shape = 'u32[]', space=smem, size = 0x4, offset = 0x4, fixed_abs, tag = 'smem constant byte address 0x4 - core index']
  #allocation1 [shape = 'u32[144,128]{1,0:T(1,128)}', space=vmem, size = 0x12000, scoped, tag = 'internal scratch']
  #allocation2 [shape = 'f32[8,120]{1,0:T(8,128)}', space=vmem, size = 0x1000, scoped, tag = 'scratch operand']
  %s0 = inlined_call_operand.vmem [shape: f32[16,32], index: 0, kind: input, shape index: {}]
  %s1 = inlined_call_operand.vmem [shape: f32[16,48], index: 1, kind: input, shape index: {}]
  %s2 = inlined_call_operand.vmem [shape: f32[16,40], index: 2, kind: input, shape index: {}]
  %s3 = inlined_call_operand.vmem [shape: f32[120,128], index: 3, kind: input, shape index: {}]
  %s4 = inlined_call_operand.vmem [shape: f32[16,128], index: 4, kind: output, shape index: {}]
  %s5 = sld [smem:[#allocation0]]
  $region49: #{linear_se3_forward.1} parent=0
    _
  %s7 = ssub.s32 1, %s5
  %s8 = scalar_select 0, %s7, %s5
  loop: start=0, step=1, limit=4
  $region2: #{linear_se3_forward.1} parent=0 // loop_pre_header
    _
  $region3: #{linear_se3_forward.1} parent=0 // loop_header
    %s10 = sphi 0, %s14
    %p11 = scmp.ge.s32.totalorder %s10, 4
    %s20 = sphi 0, %s22
    %s23 = sphi 0, %s20
    %s24 = sphi 0, %s23
    %s40 = sphi 0, %s24
    %s46 = sphi 0, %s48
    %s49 = sphi 0, %s46
    %s50 = sphi 0, %s49
    %s66 = sphi 0, %s50
    %s72 = sphi 0, %s74
    %s75 = sphi 0, %s72
    %s76 = sphi 0, %s75
    %s92 = sphi 0, %s76
    %s96 = sphi 0, %s96
    %s98 = sphi 0, %s96
    %s99 = sphi 0, %s98
    %s113 = sphi 0, %s99
    %s119 = sphi 0, %s121
    %s122 = sphi 0, %s119
    %s123 = sphi 0, %s122
    %s139 = sphi 0, %s123
  $region4: #{linear_se3_forward.1} parent=0 // loop_header_branch
    %13 = sbr.rel (%p11) target = $region8
  $region5: #{linear_se3_forward.1} parent=0 // loop_body
    %s15 = ssub.s32 %s10, 1
    %s16 = ssub.s32 %s10, 2
    %s17 = sadd.s32 %s10, 1
    %s18 = ssub.s32 %s10, %s17
    %p19 = scmp.eq.s32.totalorder %s18, 0
    %s21 = sadd.s32 %s20, 1
    %s22 = scalar_select %p19, %s20, %s21
    %p25 = pneg %p19
    %p26 = scmp.eq.s32.totalorder %s10, 1
    %p27 = por %p25, %p26
    %p28 = scmp.ne.s32.totalorder %s20, %s23
    %p29 = scmp.eq.s32.totalorder %s10, 0
    %p30 = por %p28, %p29
    %p31 = scmp.ne.s32.totalorder %s20, %s23
    %p32 = scmp.eq.s32.totalorder %s15, 1
    %p33 = por %p31, %p32
    %p34 = scmp.ne.s32.totalorder %s23, %s24
    %p35 = scmp.eq.s32.totalorder %s15, 0
    %p36 = por %p34, %p35
    %p37 = scmp.ne.s32.totalorder %s23, %s24
    %p38 = scmp.eq.s32.totalorder %s16, 1
    %p39 = por %p37, %p38
    %p41 = scmp.ne.s32.totalorder %s24, %s40
    %p42 = scmp.eq.s32.totalorder %s16, 0
    %p43 = por %p41, %p42
    %s44 = ssub.s32 %s10, %s17
    %p45 = scmp.eq.s32.totalorder %s44, 0
    %s47 = sadd.s32 %s46, 1
    %s48 = scalar_select %p45, %s46, %s47
    %p51 = pneg %p45
    %p52 = scmp.eq.s32.totalorder %s10, 1
    %p53 = por %p51, %p52
    %p54 = scmp.ne.s32.totalorder %s46, %s49
    %p55 = scmp.eq.s32.totalorder %s10, 0
    %p56 = por %p54, %p55
    %p57 = scmp.ne.s32.totalorder %s46, %s49
    %p58 = scmp.eq.s32.totalorder %s15, 1
    %p59 = por %p57, %p58
    %p60 = scmp.ne.s32.totalorder %s49, %s50
    %p61 = scmp.eq.s32.totalorder %s15, 0
    %p62 = por %p60, %p61
    %p63 = scmp.ne.s32.totalorder %s49, %s50
    %p64 = scmp.eq.s32.totalorder %s16, 1
    %p65 = por %p63, %p64
    %p67 = scmp.ne.s32.totalorder %s50, %s66
    %p68 = scmp.eq.s32.totalorder %s16, 0
    %p69 = por %p67, %p68
    %s70 = ssub.s32 %s10, %s17
    %p71 = scmp.eq.s32.totalorder %s70, 0
    %s73 = sadd.s32 %s72, 1
    %s74 = scalar_select %p71, %s72, %s73
    %p77 = pneg %p71
    %p78 = scmp.eq.s32.totalorder %s10, 1
    %p79 = por %p77, %p78
    %p80 = scmp.ne.s32.totalorder %s72, %s75
    %p81 = scmp.eq.s32.totalorder %s10, 0
    %p82 = por %p80, %p81
    %p83 = scmp.ne.s32.totalorder %s72, %s75
    %p84 = scmp.eq.s32.totalorder %s15, 1
    %p85 = por %p83, %p84
    %p86 = scmp.ne.s32.totalorder %s75, %s76
    %p87 = scmp.eq.s32.totalorder %s15, 0
    %p88 = por %p86, %p87
    %p89 = scmp.ne.s32.totalorder %s75, %s76
    %p90 = scmp.eq.s32.totalorder %s16, 1
    %p91 = por %p89, %p90
    %p93 = scmp.ne.s32.totalorder %s76, %s92
    %p94 = scmp.eq.s32.totalorder %s16, 0
    %p95 = por %p93, %p94
    %s97 = sadd.s32 %s96, 1
    %p100 = scmp.eq.s32.totalorder %s10, 1
    %p101 = scmp.ne.s32.totalorder %s96, %s98
    %p102 = scmp.eq.s32.totalorder %s10, 0
    %p103 = por %p101, %p102
    %p104 = scmp.ne.s32.totalorder %s96, %s98
    %p105 = scmp.eq.s32.totalorder %s15, 1
    %p106 = por %p104, %p105
    %p107 = scmp.ne.s32.totalorder %s98, %s99
    %p108 = scmp.eq.s32.totalorder %s15, 0
    %p109 = por %p107, %p108
    %p110 = scmp.ne.s32.totalorder %s98, %s99
    %p111 = scmp.eq.s32.totalorder %s16, 1
    %p112 = por %p110, %p111
    %p114 = scmp.ne.s32.totalorder %s99, %s113
    %p115 = scmp.eq.s32.totalorder %s16, 0
    %p116 = por %p114, %p115
    %s117 = ssub.s32 %s10, %s17
    %p118 = scmp.eq.s32.totalorder %s117, 0
    %s120 = sadd.s32 %s119, 1
    %s121 = scalar_select %p118, %s119, %s120
    %p124 = pneg %p118
    %p125 = scmp.eq.s32.totalorder %s10, 1
    %p126 = por %p124, %p125
    %p127 = scmp.ne.s32.totalorder %s119, %s122
    %p128 = scmp.eq.s32.totalorder %s10, 0
    %p129 = por %p127, %p128
    %p130 = scmp.ne.s32.totalorder %s119, %s122
    %p131 = scmp.eq.s32.totalorder %s15, 1
    %p132 = por %p130, %p131
    %p133 = scmp.ne.s32.totalorder %s122, %s123
    %p134 = scmp.eq.s32.totalorder %s15, 0
    %p135 = por %p133, %p134
    %p136 = scmp.ne.s32.totalorder %s122, %s123
    %p137 = scmp.eq.s32.totalorder %s16, 1
    %p138 = por %p136, %p137
    %p140 = scmp.ne.s32.totalorder %s123, %s139
    %p141 = scmp.eq.s32.totalorder %s16, 0
    %p142 = por %p140, %p141
    %p143 = scmp.le.s32.totalorder 1, %s10
    %p144 = scmp.lt.s32.totalorder %s10, 3
    %p145 = pnand %p143, %p144
    %p146 = pneg %p145
    // Predicated region
    $region9: #{linear_se3_forward.1} parent=5 // pred_check
      _
    $region10: #{linear_se3_forward.1} parent=5 // pred_check_branch
      %148 = sbr.rel (%p145) target = $region12
    $region11: #{linear_se3_forward.1} parent=5 // pred_region
      %s149 = ssub.s32 %s10, 1
      // Predicated region
      $region13: #{linear_se3_forward.1} parent=11 // pred_check
        %p150 = pneg %p109
      $region14: #{linear_se3_forward.1} parent=11 // pred_check_branch
        %152 = sbr.rel (%p150) target = $region16
      $region15: #{linear_se3_forward.1} parent=11 // pred_region
        _
      $region16: #{linear_se3_forward.1} parent=11 // pred_fallthru
        _
    $region12: #{linear_se3_forward.1} parent=5 // pred_fallthru
      _
    %p153 = scmp.lt.s32.totalorder %s10, 2
    // Predicated region
    $region17: #{linear_se3_forward.1} parent=5 // pred_check
      %p154 = pneg %p153
    $region18: #{linear_se3_forward.1} parent=5 // pred_check_branch
      %156 = sbr.rel (%p154) target = $region20
    $region19: #{linear_se3_forward.1} parent=5 // pred_region
      // Predicated region
      $region21: #{linear_se3_forward.1} parent=19 // pred_check
        %p157 = pneg %p30
      $region22: #{linear_se3_forward.1} parent=19 // pred_check_branch
        %159 = sbr.rel (%p157) target = $region24
      $region23: #{linear_se3_forward.1} parent=19 // pred_region
        %p160 = scmp.lt.s32.totalorder %s10, 1
        %s161 = scalar_select %p160, %s10, 1
        %s162 = smul.addr %s161, 8
        %s163 = scalar_lea.vmem %s0, %s162
      $region24: #{linear_se3_forward.1} parent=19 // pred_fallthru
        _
      // Predicated region
      $region25: #{linear_se3_forward.1} parent=19 // pred_check
        %p164 = pneg %p56
      $region26: #{linear_se3_forward.1} parent=19 // pred_check_branch
        %166 = sbr.rel (%p164) target = $region28
      $region27: #{linear_se3_forward.1} parent=19 // pred_region
        %p167 = scmp.lt.s32.totalorder %s10, 1
        %s168 = scalar_select %p167, %s10, 1
        %s169 = smul.addr %s168, 8
        %s170 = scalar_lea.vmem %s1, %s169
      $region28: #{linear_se3_forward.1} parent=19 // pred_fallthru
        _
      // Predicated region
      $region29: #{linear_se3_forward.1} parent=19 // pred_check
        %p171 = pneg %p82
      $region30: #{linear_se3_forward.1} parent=19 // pred_check_branch
        %173 = sbr.rel (%p171) target = $region32
      $region31: #{linear_se3_forward.1} parent=19 // pred_region
        %p174 = scmp.lt.s32.totalorder %s10, 1
        %s175 = scalar_select %p174, %s10, 1
        %s176 = smul.addr %s175, 8
        %s177 = scalar_lea.vmem %s2, %s176
      $region32: #{linear_se3_forward.1} parent=19 // pred_fallthru
        _
    $region20: #{linear_se3_forward.1} parent=5 // pred_fallthru
      _
    %p178 = scmp.le.s32.totalorder 1, %s10
    %p179 = scmp.lt.s32.totalorder %s10, 3
    %p180 = pnand %p178, %p179
    %p181 = pneg %p180
    // Predicated region
    $region33: #{linear_se3_forward.1} parent=5 // pred_check
      _
    $region34: #{linear_se3_forward.1} parent=5 // pred_check_branch
      %183 = sbr.rel (%p180) target = $region36
    $region35: #{linear_se3_forward.1} parent=5 // pred_region
      %s184 = ssub.s32 %s10, 1
      %p185 = scmp.lt.s32.totalorder %s15, 1
      %s186 = scalar_select %p185, %s15, 1
      %s187 = smul.addr %s186, 8
      %s188 = scalar_lea.vmem %s0, %s187
      %p189 = pneg %p36
      %p190 = pneg %p33
      %p191 = scmp.lt.s32.totalorder %s15, 1
      %s192 = scalar_select %p191, %s15, 1
      %s193 = smul.addr %s192, 8
      %s194 = scalar_lea.vmem %s1, %s193
      %p195 = pneg %p62
      %p196 = pneg %p59
      %p197 = scmp.lt.s32.totalorder %s15, 1
      %s198 = scalar_select %p197, %s15, 1
      %s199 = smul.addr %s198, 8
      %s200 = scalar_lea.vmem %s2, %s199
      %p201 = pneg %p88
      %p202 = pneg %p85
      %p203 = pneg %p109
      %p204 = pneg %p106
      %p205 = pneg %p135
      %p206 = pneg %p132
      %p207 = scmp.lt.s32.totalorder %s15, 1
      %s208 = scalar_select %p207, %s15, 1
      %s209 = smul.addr %s208, 8
      %s210 = scalar_lea.vmem %s4, %s209
      %p211 = scmp.lt.s32.totalorder %s15, 1
      %s212 = scalar_select %p211, %s15, 1
      %s213 = smul.addr %s212, 8
      %s214 = scalar_lea.vmem %s0, %s213
      %p215 = scmp.lt.s32.totalorder %s15, 1
      %s216 = scalar_select %p215, %s15, 1
      %s217 = smul.addr %s216, 8
      %s218 = scalar_lea.vmem %s1, %s217
      %p219 = scmp.lt.s32.totalorder %s15, 1
      %s220 = scalar_select %p219, %s15, 1
      %s221 = smul.addr %s220, 8
      %s222 = scalar_lea.vmem %s2, %s221
      %p223 = scmp.lt.s32.totalorder %s15, 1
      %s224 = scalar_select %p223, %s15, 1
      %s225 = smul.addr %s224, 8
      %s226 = scalar_lea.vmem %s4, %s225
      %v227 = vld [vmem:[%s214] sm:$0xff]
      %vm228 = vcmask 261120
      %229 = vst.msk [vmem:[#allocation2] sm:$0xff] %vm228, %v227
      %v230 = vld [vmem:[%s218] sm:$0xff]
      %232 = vrot.lane.b32.xlu0 %v230, 32
      %v233 = vpop.permute.xlu0 %232
      %vm235 = vcmask 654592
      %236 = vst.msk [vmem:[#allocation2] sm:$0xff] %vm235, %v233
      %v237 = vld [vmem:[%s222] sm:$0xff]
      %239 = vrot.lane.b32.xlu0 %v237, 80
      %v240 = vpop.permute.xlu0 %239
      %vm242 = vcmask 982656
      %243 = vst.msk [vmem:[#allocation2] sm:$0xff] %vm242, %v240
      %v244 = vld [vmem:[#allocation2] sm:$0xff]
      %v245 = vld [vmem:[%s3] sm:$0xff]
      %v246 = vld [vmem:[%s3 + $0x8] sm:$0xff]
      %v247 = vld [vmem:[%s3 + $0x10] sm:$0xff]
      %v248 = vld [vmem:[%s3 + $0x18] sm:$0xff]
      %v249 = vld [vmem:[%s3 + $0x20] sm:$0xff]
      %v250 = vld [vmem:[%s3 + $0x28] sm:$0xff]
      %v251 = vld [vmem:[%s3 + $0x30] sm:$0xff]
      %v252 = vld [vmem:[%s3 + $0x38] sm:$0xff]
      %v253 = vld [vmem:[%s3 + $0x40] sm:$0xff]
      %v254 = vld [vmem:[%s3 + $0x48] sm:$0xff]
      %v255 = vld [vmem:[%s3 + $0x50] sm:$0xff]
      %v256 = vld [vmem:[%s3 + $0x58] sm:$0xff]
      %v257 = vld [vmem:[%s3 + $0x60] sm:$0xff]
      %v258 = vld [vmem:[%s3 + $0x68] sm:$0xff]
      %v259 = vld [vmem:[%s3 + $0x70] sm:$0xff]
      %vm260 = vcmask 982016
      %v262 = vsel %vm260, %v244, 0
      %264 = vmatprep.subr.mxu0 0.0
      %265 = vmatpush1.msra.mxu0 %v245
      %266 = vmatprep.subr.mxu0 0.0
      %267 = vmatpush1.msra.mxu0 %v246
      %268 = vmatprep.subr.mxu0 0.0
      %269 = vmatpush1.msra.mxu0 %v247
      %270 = vmatprep.subr.mxu0 0.0
      %271 = vmatpush1.msra.mxu0 %v248
      %272 = vmatprep.subr.mxu0 0.0
      %273 = vmatpush1.msra.mxu0 %v249
      %274 = vmatprep.subr.mxu0 0.0
      %275 = vmatpush1.msra.mxu0 %v250
      %276 = vmatprep.subr.mxu0 0.0
      %277 = vmatpush1.msra.mxu0 %v251
      %278 = vmatprep.subr.mxu0 0.0
      %279 = vmatpush1.msra.mxu0 %v252
      %280 = vmatprep.subr.mxu0 0.0
      %281 = vmatpush1.msra.mxu0 %v253
      %282 = vmatprep.subr.mxu0 0.0
      %283 = vmatpush1.msra.mxu0 %v254
      %284 = vmatprep.subr.mxu0 0.0
      %285 = vmatpush1.msra.mxu0 %v255
      %286 = vmatprep.subr.mxu0 0.0
      %287 = vmatpush1.msra.mxu0 %v256
      %288 = vmatprep.subr.mxu0 0.0
      %289 = vmatpush1.msra.mxu0 %v257
      %290 = vmatprep.subr.mxu0 0.0
      %291 = vmatpush1.msra.mxu0 %v258
      %292 = vmatprep.subr.mxu0 0.0
      %293 = vmatpush1.msra.mxu0 %v259
      %294 = vmatprep.subr.mxu0 0.0
      %295 = vmatpush1.msra.mxu0 0.0
      %296 = vmatprep.subr.mxu0 0.0
      %297 = vmatpush1.msra.mxu0 0.0
      %298 = vmatprep.subr.mxu0 0.0
      %299 = vmatpush1.msra.mxu0 0.0
      %300 = vmatprep.subr.mxu0 0.0
      %301 = vmatpush1.msra.mxu0 0.0
      %302 = vmatprep.subr.mxu0 0.0
      %303 = vmatpush1.msra.mxu0 0.0
      %304 = vmatprep.subr.mxu0 0.0
      %305 = vmatpush1.msra.mxu0 0.0
      %306 = vmatprep.subr.mxu0 0.0
      %307 = vmatpush1.msra.mxu0 0.0
      %308 = vmatprep.subr.mxu0 0.0
      %309 = vmatpush1.msra.mxu0 0.0
      %310 = vmatprep.subr.mxu0 0.0
      %311 = vmatpush1.msra.mxu0 0.0
      %312 = vmatprep.subr.mxu0 0.0
      %313 = vmatpush1.msra.mxu0 0.0
      %314 = vmatprep.subr.mxu0 0.0
      %315 = vmatpush1.msra.mxu0 0.0
      %316 = vmatprep.subr.mxu0 0.0
      %317 = vmatpush1.msra.mxu0 0.0
      %318 = vmatprep.subr.mxu0 0.0
      %319 = vmatpush1.msra.mxu0 0.0
      %320 = vmatprep.subr.mxu0 0.0
      %321 = vmatpush1.msra.mxu0 0.0
      %322 = vmatprep.subr.mxu0 0.0
      %323 = vmatpush1.msra.mxu0 0.0
      %324 = vmatprep.subr.mxu0 0.0
      %325 = vmatpush1.msra.mxu0 0.0
      %326 = vmatprep.subr.mxu0 0.0
      %327 = vmatpush1.msra.mxu0 0.0
      %328 = vmatprep.mubr.f32.mxu0 0.0
      %329 = vmatmul.mubr.f32.gmra.mrb[0].mxu0 %v262
      %v330 = vpop.f32.mrb[0].mxu0
      %v331 = vadd.f32 0.0, %v330
      %v332 = vpop.f32.mrb[0].mxu0
      %333 = vdwg.mxu0
      %334 = vst [vmem:[%s226] sm:$0xff] %v331
      %p335 = scmp.lt.s32.totalorder %s15, 1
      %s336 = scalar_select %p335, %s15, 1
      %s337 = smul.addr %s336, 8
      %s338 = scalar_lea.vmem %s4, %s337
      // Predicated region
      $region37: #{linear_se3_forward.1} parent=35 // pred_check
        %p339 = pneg %p132
      $region38: #{linear_se3_forward.1} parent=35 // pred_check_branch
        %341 = sbr.rel (%p339) target = $region40
      $region39: #{linear_se3_forward.1} parent=35 // pred_region
        _
      $region40: #{linear_se3_forward.1} parent=35 // pred_fallthru
        _
    $region36: #{linear_se3_forward.1} parent=5 // pred_fallthru
      _
    %p342 = scmp.le.s32.totalorder 2, %s10
    // Predicated region
    $region41: #{linear_se3_forward.1} parent=5 // pred_check
      %p343 = pneg %p342
    $region42: #{linear_se3_forward.1} parent=5 // pred_check_branch
      %345 = sbr.rel (%p343) target = $region44
    $region43: #{linear_se3_forward.1} parent=5 // pred_region
      %s346 = ssub.s32 %s10, 2
      // Predicated region
      $region45: #{linear_se3_forward.1} parent=43 // pred_check
        %p347 = pneg %p138
      $region46: #{linear_se3_forward.1} parent=43 // pred_check_branch
        %349 = sbr.rel (%p347) target = $region48
      $region47: #{linear_se3_forward.1} parent=43 // pred_region
        %p350 = scmp.lt.s32.totalorder %s16, 1
        %s351 = scalar_select %p350, %s16, 1
        %s352 = smul.addr %s351, 8
        %s353 = scalar_lea.vmem %s4, %s352
      $region48: #{linear_se3_forward.1} parent=43 // pred_fallthru
        _
    $region44: #{linear_se3_forward.1} parent=5 // pred_fallthru
      _
  $region6: #{linear_se3_forward.1} parent=0 // loop_footer
    %s14 = sadd.s32 1, %s10
  $region7: #{linear_se3_forward.1} parent=0 // loop_footer_branch
    %9 = sbr.rel target = $region3
  $region8: #{linear_se3_forward.1} parent=0 // loop_exit
    _

</llo_original>
